<compile_context>
chip_gen: v5e
topology: v5e:2x2
jax: 0.10.0
libtpu: 0.0.40
codegen_flags: <defaults>
</compile_context>

<pallas_src>
import functools

import jax
import jax.numpy as jnp
from jax.experimental import pallas as pl

BN_EPS = 1e-5
LANE = 128  # TPU lane width: keep every feature dim a multiple of this.


def _round_up(n, m):
    return ((n + m - 1) // m) * m


def _full_spec(shape):
    # One block == the whole array (no grid), resident in VMEM.
    return pl.BlockSpec(shape, lambda: (0,) * len(shape))


# ---------------------------------------------------------------------------
# Fused kernel: 4 x (Linear(no bias) + BatchNorm1d(train) + ReLU) + Linear + Sigmoid
#
# vec_ref layout (f32, shape (9, Cmax)):
#   rows 0..3 : gamma for blocks 0..3   (lane-padded with 0)
#   rows 4..7 : beta  for blocks 0..3   (lane-padded with 0)
#   row  8    : final Linear bias       (lane-padded with 0)
# ---------------------------------------------------------------------------
def _fused_generator_kernel(x_ref, w0_ref, w1_ref, w2_ref, w3_ref, wf_ref,
                            vec_ref, o_ref, *, col_dims):
    c0, c1, c2, c3, cf = col_dims

    def block(x_bf16, w_ref, gamma, beta):
        # Linear, block bias dropped (cancels exactly against the BN mean).
        y = jnp.dot(x_bf16, w_ref[...], preferred_element_type=jnp.float32)  # (B, C) f32
        # BatchNorm1d training mode, single-pass biased batch statistics.
        mean = jnp.mean(y, axis=0, keepdims=True)          # (1, C)
        mean_sq = jnp.mean(y * y, axis=0, keepdims=True)   # (1, C)
        var = mean_sq - mean * mean                        # padded lanes: exactly 0
        # Folded affine: (y - mean) * gamma * rsqrt(var+eps) + beta
        scale = gamma * jax.lax.rsqrt(var + BN_EPS)        # (1, C)
        shift = beta - mean * scale                        # (1, C)
        # ReLU fused in. Padded lanes (gamma=beta=0, y=0) stay exactly 0.
        h = jnp.maximum(y * scale + shift, 0.0)
        return h.astype(jnp.bfloat16)                      # bf16 operand for next MXU

    x = x_ref[...]  # (B, Zp) bf16, pre-cast in the wrapper
    x = block(x, w0_ref, vec_ref[0:1, :c0], vec_ref[4:5, :c0])
    x = block(x, w1_ref, vec_ref[1:2, :c1], vec_ref[5:6, :c1])
    x = block(x, w2_ref, vec_ref[2:3, :c2], vec_ref[6:7, :c2])
    x = block(x, w3_ref, vec_ref[3:4, :c3], vec_ref[7:8, :c3])

    # Final Linear + Sigmoid. Padded output lanes -> sigmoid(0)=0.5, sliced away
    # outside the kernel. Sigmoid = 1 / (1 + exp(-y)) with EUP exp + approx recip.
    y = jnp.dot(x, wf_ref[...], preferred_element_type=jnp.float32) + vec_ref[8:9, :cf]
    o_ref[...] = pl.reciprocal(1.0 + jnp.exp(-y), approx=True)


def _fused_generator_call(noise_p, weights, vec):
    B = noise_p.shape[0]
    col_dims = tuple(int(w.shape[1]) for w in weights)   # static (trace-time) ints
    out_cols = col_dims[-1]

    kernel = functools.partial(_fused_generator_kernel, col_dims=col_dims)
    inputs = [noise_p] + list(weights) + [vec]            # 7 inputs total
    in_specs = [_full_spec(a.shape) for a in inputs]

    return pl.pallas_call(
        kernel,
        out_shape=jax.ShapeDtypeStruct((B, out_cols), jnp.float32),
        in_specs=in_specs,
        out_specs=_full_spec((B, out_cols)),
    )(*inputs)


# ---------------------------------------------------------------------------
# Parameter init (mirrors nn.Linear default U(-1/sqrt(in), 1/sqrt(in)),
# BatchNorm gamma=1 / beta=0). Unpadded f32 — the "PyTorch-equivalent" params.
# ---------------------------------------------------------------------------
def init_linear(key, in_dim, out_dim):
    kw, kb = jax.random.split(key)
    bound = 1.0 / jnp.sqrt(jnp.asarray(in_dim, jnp.float32))
    w = jax.random.uniform(kw, (in_dim, out_dim), jnp.float32, -bound, bound)
    b = jax.random.uniform(kb, (1, out_dim), jnp.float32, -bound, bound)
    return w, b


def init_generator_params(key, z_dim, img_dim, hidden_dim):
    dims = [z_dim, hidden_dim, hidden_dim * 2, hidden_dim * 4, hidden_dim * 8]
    keys = jax.random.split(key, 5)
    params = {"blocks": [], "final": None}
    for i in range(4):
        w, b = init_linear(keys[i], dims[i], dims[i + 1])
        gamma = jnp.ones((1, dims[i + 1]), jnp.float32)
        beta = jnp.zeros((1, dims[i + 1]), jnp.float32)
        params["blocks"].append((w, b, gamma, beta))
    params["final"] = init_linear(keys[4], dims[4], img_dim)
    return params


# ---------------------------------------------------------------------------
# Lane padding + coalescing (done once, outside the kernel).
#   * Weights lane-padded with zeros and pre-cast to bf16 for the MXU.
#   * gamma/beta/final-bias packed into one (9, Cmax) f32 slab (padded cols = 0).
#   * Per-block Linear biases are intentionally NOT packed — they cancel in BN.
# ---------------------------------------------------------------------------
def _pad2d(a, rows, cols):
    out = jnp.zeros((rows, cols), a.dtype)
    return out.at[: a.shape[0], : a.shape[1]].set(a)


def pad_generator_params(params):
    weights = []
    out_pads = []
    for (w, _b, _g, _be) in params["blocks"]:
        ci, co = w.shape
        cip, cop = _round_up(ci, LANE), _round_up(co, LANE)
        weights.append(_pad2d(w, cip, cop).astype(jnp.bfloat16))
        out_pads.append(cop)
    wf, bf = params["final"]
    ci, co = wf.shape
    cip, cop = _round_up(ci, LANE), _round_up(co, LANE)
    weights.append(_pad2d(wf, cip, cop).astype(jnp.bfloat16))
    out_pads.append(cop)

    cmax = max(out_pads)
    vec = jnp.zeros((9, cmax), jnp.float32)
    for i, (_w, _b, g, be) in enumerate(params["blocks"]):
        vec = vec.at[i, : g.shape[1]].set(g[0])
        vec = vec.at[4 + i, : be.shape[1]].set(be[0])
    vec = vec.at[8, : bf.shape[1]].set(bf[0])

    return {"weights": weights, "vec": vec}


@functools.partial(jax.jit, static_argnames=("img_dim",))
def generator_forward(noise, padded_params, img_dim):
    weights = padded_params["weights"]
    vec = padded_params["vec"]
    B, z = noise.shape
    z_pad = weights[0].shape[0]
    # Pad lanes only (never the batch/sublane axis) and pre-cast to bf16.
    noise_p = jnp.pad(noise, ((0, 0), (0, z_pad - z))).astype(jnp.bfloat16)
    out_p = _fused_generator_call(noise_p, weights, vec)
    return out_p[:, :img_dim]   # drop padded lanes outside the kernel


# ---------------------------------------------------------------------------
# Pure-JAX reference: PyTorch-faithful math (block biases kept, two-pass
# variance, exact sigmoid) with the same bf16-operand / f32-accumulate matmuls.
# ---------------------------------------------------------------------------
def generator_reference(noise, params):
    x = noise
    for (w, b, g, be) in params["blocks"]:
        y = jnp.dot(x.astype(jnp.bfloat16), w.astype(jnp.bfloat16),
                    preferred_element_type=jnp.float32) + b
        mean = jnp.mean(y, axis=0, keepdims=True)
        var = jnp.mean((y - mean) ** 2, axis=0, keepdims=True)
        x = jnp.maximum(g * (y - mean) * jax.lax.rsqrt(var + BN_EPS) + be, 0.0)
    wf, bf = params["final"]
    y = jnp.dot(x.astype(jnp.bfloat16), wf.astype(jnp.bfloat16),
                preferred_element_type=jnp.float32) + bf
    return jax.nn.sigmoid(y)


if __name__ == "__main__":
    # Small shapes consistent with the module: batch=8, z_dim=16, hidden_dim=32, img_dim=64
    B, Z_DIM, HIDDEN_DIM, IMG_DIM = 8, 16, 32, 64

    key = jax.random.PRNGKey(0)
    k_noise, k_params = jax.random.split(key)

    noise = jax.random.normal(k_noise, (B, Z_DIM), jnp.float32)
    params = init_generator_params(k_params, Z_DIM, IMG_DIM, HIDDEN_DIM)
    padded_params = pad_generator_params(params)

    out = generator_forward(noise, padded_params, img_dim=IMG_DIM)
    out = jax.block_until_ready(out)

    assert out.shape == (B, IMG_DIM), out.shape
    # Approx reciprocal in the sigmoid may overshoot [0,1] by ~1e-4; allow slack.
    assert bool(jnp.all(out >= -1e-3)) and bool(jnp.all(out <= 1.0 + 1e-3))

    # TODO(synk): nn.BatchNorm1d running_mean/running_var (momentum) updates are
    # stateful and not modeled; only training-mode batch-stat normalization is done.
    ref = generator_reference(noise, params)
    max_err = float(jnp.max(jnp.abs(out - ref)))
    assert bool(jnp.allclose(out, ref, atol=5e-3, rtol=5e-3)), max_err

    print("KERNEL_OK")
</pallas_src>

<mosaic_0001>
module attributes {stable_mosaic.version = 11 : i64} {
  func.func @_fused_generator_kernel(%arg0: memref<8x128xbf16, #tpu.memory_space<vmem>>, %arg1: memref<128x128xbf16, #tpu.memory_space<vmem>>, %arg2: memref<128x128xbf16, #tpu.memory_space<vmem>>, %arg3: memref<128x128xbf16, #tpu.memory_space<vmem>>, %arg4: memref<128x256xbf16, #tpu.memory_space<vmem>>, %arg5: memref<256x128xbf16, #tpu.memory_space<vmem>>, %arg6: memref<9x256xf32, #tpu.memory_space<vmem>>, %arg7: memref<8x128xf32, #tpu.memory_space<vmem>>) attributes {dimension_semantics = [], scalar_prefetch = 0 : i64, scratch_operands = 0 : i64, tpu.core_type = #tpu.core_type<tc>} {
    %c0 = arith.constant 0 : index
    %c0_0 = arith.constant 0 : index
    %0 = vector.load %arg0[%c0, %c0_0] : memref<8x128xbf16, #tpu.memory_space<vmem>>, vector<8x128xbf16>
    %c0_1 = arith.constant 0 : index
    %c0_2 = arith.constant 0 : index
    %1 = vector.load %arg6[%c0_1, %c0_2] : memref<9x256xf32, #tpu.memory_space<vmem>>, vector<1x128xf32>
    %c4 = arith.constant 4 : index
    %c0_3 = arith.constant 0 : index
    %2 = vector.load %arg6[%c4, %c0_3] : memref<9x256xf32, #tpu.memory_space<vmem>>, vector<1x128xf32>
    %c0_4 = arith.constant 0 : index
    %c0_5 = arith.constant 0 : index
    %3 = vector.load %arg1[%c0_4, %c0_5] : memref<128x128xbf16, #tpu.memory_space<vmem>>, vector<128x128xbf16>
    %cst = arith.constant dense<0.000000e+00> : vector<8x128xf32>
    %4 = tpu.matmul %0, %3, %cst {dimension_numbers = #tpu.dot_dimension_numbers<[1], [0], [0], [1], [0, 0, 1, 1], [], []>} : vector<8x128xbf16>, vector<128x128xbf16>, vector<8x128xf32> -> vector<8x128xf32>
    %cst_6 = arith.constant dense<0.000000e+00> : vector<128xf32>
    %5 = vector.multi_reduction <add>, %4, %cst_6 [0] : vector<8x128xf32> to vector<128xf32>
    %6 = vector.shape_cast %5 : vector<128xf32> to vector<1x128xf32>
    %cst_7 = arith.constant 8.000000e+00 : f32
    %7 = vector.broadcast %cst_7 : f32 to vector<1x128xf32>
    %8 = arith.divf %6, %7 : vector<1x128xf32>
    %9 = arith.mulf %4, %4 : vector<8x128xf32>
    %cst_8 = arith.constant dense<0.000000e+00> : vector<128xf32>
    %10 = vector.multi_reduction <add>, %9, %cst_8 [0] : vector<8x128xf32> to vector<128xf32>
    %11 = vector.shape_cast %10 : vector<128xf32> to vector<1x128xf32>
    %cst_9 = arith.constant 8.000000e+00 : f32
    %12 = vector.broadcast %cst_9 : f32 to vector<1x128xf32>
    %13 = arith.divf %11, %12 : vector<1x128xf32>
    %14 = arith.mulf %8, %8 : vector<1x128xf32>
    %15 = arith.subf %13, %14 : vector<1x128xf32>
    %cst_10 = arith.constant 9.99999974E-6 : f32
    %16 = vector.broadcast %cst_10 : f32 to vector<1x128xf32>
    %17 = arith.addf %15, %16 : vector<1x128xf32>
    %18 = math.rsqrt %17 : vector<1x128xf32>
    %19 = arith.mulf %1, %18 : vector<1x128xf32>
    %20 = arith.mulf %8, %19 : vector<1x128xf32>
    %21 = arith.subf %2, %20 : vector<1x128xf32>
    %22 = vector.broadcast %19 : vector<1x128xf32> to vector<8x128xf32>
    %23 = arith.mulf %4, %22 : vector<8x128xf32>
    %24 = vector.broadcast %21 : vector<1x128xf32> to vector<8x128xf32>
    %25 = arith.addf %23, %24 : vector<8x128xf32>
    %cst_11 = arith.constant 0.000000e+00 : f32
    %26 = vector.broadcast %cst_11 : f32 to vector<8x128xf32>
    %27 = arith.maximumf %25, %26 : vector<8x128xf32>
    %28 = arith.truncf %27 : vector<8x128xf32> to vector<8x128xbf16>
    %c1 = arith.constant 1 : index
    %c0_12 = arith.constant 0 : index
    %29 = vector.load %arg6[%c1, %c0_12] : memref<9x256xf32, #tpu.memory_space<vmem>>, vector<1x128xf32>
    %c5 = arith.constant 5 : index
    %c0_13 = arith.constant 0 : index
    %30 = vector.load %arg6[%c5, %c0_13] : memref<9x256xf32, #tpu.memory_space<vmem>>, vector<1x128xf32>
    %c0_14 = arith.constant 0 : index
    %c0_15 = arith.constant 0 : index
    %31 = vector.load %arg2[%c0_14, %c0_15] : memref<128x128xbf16, #tpu.memory_space<vmem>>, vector<128x128xbf16>
    %cst_16 = arith.constant dense<0.000000e+00> : vector<8x128xf32>
    %32 = tpu.matmul %28, %31, %cst_16 {dimension_numbers = #tpu.dot_dimension_numbers<[1], [0], [0], [1], [0, 0, 1, 1], [], []>} : vector<8x128xbf16>, vector<128x128xbf16>, vector<8x128xf32> -> vector<8x128xf32>
    %cst_17 = arith.constant dense<0.000000e+00> : vector<128xf32>
    %33 = vector.multi_reduction <add>, %32, %cst_17 [0] : vector<8x128xf32> to vector<128xf32>
    %34 = vector.shape_cast %33 : vector<128xf32> to vector<1x128xf32>
    %cst_18 = arith.constant 8.000000e+00 : f32
    %35 = vector.broadcast %cst_18 : f32 to vector<1x128xf32>
    %36 = arith.divf %34, %35 : vector<1x128xf32>
    %37 = arith.mulf %32, %32 : vector<8x128xf32>
    %cst_19 = arith.constant dense<0.000000e+00> : vector<128xf32>
    %38 = vector.multi_reduction <add>, %37, %cst_19 [0] : vector<8x128xf32> to vector<128xf32>
    %39 = vector.shape_cast %38 : vector<128xf32> to vector<1x128xf32>
    %cst_20 = arith.constant 8.000000e+00 : f32
    %40 = vector.broadcast %cst_20 : f32 to vector<1x128xf32>
    %41 = arith.divf %39, %40 : vector<1x128xf32>
    %42 = arith.mulf %36, %36 : vector<1x128xf32>
    %43 = arith.subf %41, %42 : vector<1x128xf32>
    %cst_21 = arith.constant 9.99999974E-6 : f32
    %44 = vector.broadcast %cst_21 : f32 to vector<1x128xf32>
    %45 = arith.addf %43, %44 : vector<1x128xf32>
    %46 = math.rsqrt %45 : vector<1x128xf32>
    %47 = arith.mulf %29, %46 : vector<1x128xf32>
    %48 = arith.mulf %36, %47 : vector<1x128xf32>
    %49 = arith.subf %30, %48 : vector<1x128xf32>
    %50 = vector.broadcast %47 : vector<1x128xf32> to vector<8x128xf32>
    %51 = arith.mulf %32, %50 : vector<8x128xf32>
    %52 = vector.broadcast %49 : vector<1x128xf32> to vector<8x128xf32>
    %53 = arith.addf %51, %52 : vector<8x128xf32>
    %cst_22 = arith.constant 0.000000e+00 : f32
    %54 = vector.broadcast %cst_22 : f32 to vector<8x128xf32>
    %55 = arith.maximumf %53, %54 : vector<8x128xf32>
    %56 = arith.truncf %55 : vector<8x128xf32> to vector<8x128xbf16>
    %c2 = arith.constant 2 : index
    %c0_23 = arith.constant 0 : index
    %57 = vector.load %arg6[%c2, %c0_23] : memref<9x256xf32, #tpu.memory_space<vmem>>, vector<1x128xf32>
    %c6 = arith.constant 6 : index
    %c0_24 = arith.constant 0 : index
    %58 = vector.load %arg6[%c6, %c0_24] : memref<9x256xf32, #tpu.memory_space<vmem>>, vector<1x128xf32>
    %c0_25 = arith.constant 0 : index
    %c0_26 = arith.constant 0 : index
    %59 = vector.load %arg3[%c0_25, %c0_26] : memref<128x128xbf16, #tpu.memory_space<vmem>>, vector<128x128xbf16>
    %cst_27 = arith.constant dense<0.000000e+00> : vector<8x128xf32>
    %60 = tpu.matmul %56, %59, %cst_27 {dimension_numbers = #tpu.dot_dimension_numbers<[1], [0], [0], [1], [0, 0, 1, 1], [], []>} : vector<8x128xbf16>, vector<128x128xbf16>, vector<8x128xf32> -> vector<8x128xf32>
    %cst_28 = arith.constant dense<0.000000e+00> : vector<128xf32>
    %61 = vector.multi_reduction <add>, %60, %cst_28 [0] : vector<8x128xf32> to vector<128xf32>
    %62 = vector.shape_cast %61 : vector<128xf32> to vector<1x128xf32>
    %cst_29 = arith.constant 8.000000e+00 : f32
    %63 = vector.broadcast %cst_29 : f32 to vector<1x128xf32>
    %64 = arith.divf %62, %63 : vector<1x128xf32>
    %65 = arith.mulf %60, %60 : vector<8x128xf32>
    %cst_30 = arith.constant dense<0.000000e+00> : vector<128xf32>
    %66 = vector.multi_reduction <add>, %65, %cst_30 [0] : vector<8x128xf32> to vector<128xf32>
    %67 = vector.shape_cast %66 : vector<128xf32> to vector<1x128xf32>
    %cst_31 = arith.constant 8.000000e+00 : f32
    %68 = vector.broadcast %cst_31 : f32 to vector<1x128xf32>
    %69 = arith.divf %67, %68 : vector<1x128xf32>
    %70 = arith.mulf %64, %64 : vector<1x128xf32>
    %71 = arith.subf %69, %70 : vector<1x128xf32>
    %cst_32 = arith.constant 9.99999974E-6 : f32
    %72 = vector.broadcast %cst_32 : f32 to vector<1x128xf32>
    %73 = arith.addf %71, %72 : vector<1x128xf32>
    %74 = math.rsqrt %73 : vector<1x128xf32>
    %75 = arith.mulf %57, %74 : vector<1x128xf32>
    %76 = arith.mulf %64, %75 : vector<1x128xf32>
    %77 = arith.subf %58, %76 : vector<1x128xf32>
    %78 = vector.broadcast %75 : vector<1x128xf32> to vector<8x128xf32>
    %79 = arith.mulf %60, %78 : vector<8x128xf32>
    %80 = vector.broadcast %77 : vector<1x128xf32> to vector<8x128xf32>
    %81 = arith.addf %79, %80 : vector<8x128xf32>
    %cst_33 = arith.constant 0.000000e+00 : f32
    %82 = vector.broadcast %cst_33 : f32 to vector<8x128xf32>
    %83 = arith.maximumf %81, %82 : vector<8x128xf32>
    %84 = arith.truncf %83 : vector<8x128xf32> to vector<8x128xbf16>
    %c3 = arith.constant 3 : index
    %c0_34 = arith.constant 0 : index
    %85 = vector.load %arg6[%c3, %c0_34] : memref<9x256xf32, #tpu.memory_space<vmem>>, vector<1x256xf32>
    %c7 = arith.constant 7 : index
    %c0_35 = arith.constant 0 : index
    %86 = vector.load %arg6[%c7, %c0_35] : memref<9x256xf32, #tpu.memory_space<vmem>>, vector<1x256xf32>
    %c0_36 = arith.constant 0 : index
    %c0_37 = arith.constant 0 : index
    %87 = vector.load %arg4[%c0_36, %c0_37] : memref<128x256xbf16, #tpu.memory_space<vmem>>, vector<128x256xbf16>
    %cst_38 = arith.constant dense<0.000000e+00> : vector<8x256xf32>
    %88 = tpu.matmul %84, %87, %cst_38 {dimension_numbers = #tpu.dot_dimension_numbers<[1], [0], [0], [1], [0, 0, 1, 1], [], []>} : vector<8x128xbf16>, vector<128x256xbf16>, vector<8x256xf32> -> vector<8x256xf32>
    %cst_39 = arith.constant dense<0.000000e+00> : vector<256xf32>
    %89 = vector.multi_reduction <add>, %88, %cst_39 [0] : vector<8x256xf32> to vector<256xf32>
    %90 = vector.shape_cast %89 : vector<256xf32> to vector<1x256xf32>
    %cst_40 = arith.constant 8.000000e+00 : f32
    %91 = vector.broadcast %cst_40 : f32 to vector<1x256xf32>
    %92 = arith.divf %90, %91 : vector<1x256xf32>
    %93 = arith.mulf %88, %88 : vector<8x256xf32>
    %cst_41 = arith.constant dense<0.000000e+00> : vector<256xf32>
    %94 = vector.multi_reduction <add>, %93, %cst_41 [0] : vector<8x256xf32> to vector<256xf32>
    %95 = vector.shape_cast %94 : vector<256xf32> to vector<1x256xf32>
    %cst_42 = arith.constant 8.000000e+00 : f32
    %96 = vector.broadcast %cst_42 : f32 to vector<1x256xf32>
    %97 = arith.divf %95, %96 : vector<1x256xf32>
    %98 = arith.mulf %92, %92 : vector<1x256xf32>
    %99 = arith.subf %97, %98 : vector<1x256xf32>
    %cst_43 = arith.constant 9.99999974E-6 : f32
    %100 = vector.broadcast %cst_43 : f32 to vector<1x256xf32>
    %101 = arith.addf %99, %100 : vector<1x256xf32>
    %102 = math.rsqrt %101 : vector<1x256xf32>
    %103 = arith.mulf %85, %102 : vector<1x256xf32>
    %104 = arith.mulf %92, %103 : vector<1x256xf32>
    %105 = arith.subf %86, %104 : vector<1x256xf32>
    %106 = vector.broadcast %103 : vector<1x256xf32> to vector<8x256xf32>
    %107 = arith.mulf %88, %106 : vector<8x256xf32>
    %108 = vector.broadcast %105 : vector<1x256xf32> to vector<8x256xf32>
    %109 = arith.addf %107, %108 : vector<8x256xf32>
    %cst_44 = arith.constant 0.000000e+00 : f32
    %110 = vector.broadcast %cst_44 : f32 to vector<8x256xf32>
    %111 = arith.maximumf %109, %110 : vector<8x256xf32>
    %112 = arith.truncf %111 : vector<8x256xf32> to vector<8x256xbf16>
    %c0_45 = arith.constant 0 : index
    %c0_46 = arith.constant 0 : index
    %113 = vector.load %arg5[%c0_45, %c0_46] : memref<256x128xbf16, #tpu.memory_space<vmem>>, vector<256x128xbf16>
    %cst_47 = arith.constant dense<0.000000e+00> : vector<8x128xf32>
    %114 = tpu.matmul %112, %113, %cst_47 {dimension_numbers = #tpu.dot_dimension_numbers<[1], [0], [0], [1], [0, 0, 1, 1], [], []>} : vector<8x256xbf16>, vector<256x128xbf16>, vector<8x128xf32> -> vector<8x128xf32>
    %c8 = arith.constant 8 : index
    %c0_48 = arith.constant 0 : index
    %115 = vector.load %arg6[%c8, %c0_48] : memref<9x256xf32, #tpu.memory_space<vmem>>, vector<1x128xf32>
    %116 = vector.broadcast %115 : vector<1x128xf32> to vector<8x128xf32>
    %117 = arith.addf %114, %116 : vector<8x128xf32>
    %cst_49 = arith.constant 0.000000e+00 : f32
    %118 = vector.broadcast %cst_49 : f32 to vector<8x128xf32>
    %119 = arith.subf %118, %117 : vector<8x128xf32>
    %120 = math.exp %119 : vector<8x128xf32>
    %cst_50 = arith.constant 1.000000e+00 : f32
    %121 = vector.broadcast %cst_50 : f32 to vector<8x128xf32>
    %122 = arith.addf %121, %120 : vector<8x128xf32>
    %123 = tpu.reciprocal %122 {approx = true} : vector<8x128xf32> -> vector<8x128xf32>
    %c0_51 = arith.constant 0 : index
    %c0_52 = arith.constant 0 : index
    %124 = vector.load %arg7[%c0_51, %c0_52] : memref<8x128xf32, #tpu.memory_space<vmem>>, vector<8x128xf32>
    tpu.vector_store %arg7[%c0_51, %c0_52], %123 {strides = array<i32>} : memref<8x128xf32, #tpu.memory_space<vmem>>, vector<8x128xf32>,
    return
  }
}

</mosaic_0001>

<llo_original>
// kernel: generator_forward.1
$region0: #{generator_forward.1}
  #allocation0 [shape = 'u32[]', space=smem, size = 0x4, offset = 0x4, fixed_abs, tag = 'smem constant byte address 0x4 - core index']
  #allocation1 [shape = 'u32[72,128]{1,0:T(1,128)}', space=vmem, size = 0x9000, scoped, tag = 'internal scratch']
  %s0 = inlined_call_operand.vmem [shape: bf16[8,128], index: 0, kind: input, shape index: {}]
  %s1 = inlined_call_operand.hbm [shape: bf16[128,128], index: 1, kind: input, shape index: {}]
  %s2 = inlined_call_operand.hbm [shape: bf16[128,128], index: 2, kind: input, shape index: {}]
  %s3 = inlined_call_operand.hbm [shape: bf16[128,128], index: 3, kind: input, shape index: {}]
  %s4 = inlined_call_operand.hbm [shape: bf16[128,256], index: 4, kind: input, shape index: {}]
  %s5 = inlined_call_operand.hbm [shape: bf16[256,128], index: 5, kind: input, shape index: {}]
  %s6 = inlined_call_operand.hbm [shape: f32[9,256], index: 6, kind: input, shape index: {}]
  %s7 = inlined_call_operand.hbm [shape: f32[8,128], index: 7, kind: output, shape index: {}]
  %s8 = sld [smem:[#allocation0]]
  $region62: #{generator_forward.1} parent=0
    _
  %s10 = ssub.s32 1, %s8
  %s11 = scalar_select 0, %s10, %s8
  $region1: #{generator_forward.1} parent=0
    #allocation2 [shape = 'u8[32768]{0}', space=vmem, size = 0x8000, scoped, tag = 'input window, operand 1, single buffered']
    #allocation3 [shape = 's32[1]{0}', space=sflag, size = 0x4, scoped, tag = 'scoped memory for generator_forward.1']
    #allocation4 [shape = 's32[1]{0}', space=sflag, size = 0x4, scoped, tag = 'scoped memory for generator_forward.1']
    #allocation5 [shape = 'u8[32768]{0}', space=vmem, size = 0x8000, scoped, tag = 'input window, operand 2, single buffered']
    #allocation6 [shape = 's32[1]{0}', space=sflag, size = 0x4, scoped, tag = 'scoped memory for generator_forward.1']
    #allocation7 [shape = 'u8[32768]{0}', space=vmem, size = 0x8000, scoped, tag = 'input window, operand 3, single buffered']
    #allocation8 [shape = 'u8[65536]{0}', space=vmem, size = 0x10000, scoped, tag = 'input window, operand 4, single buffered']
    #allocation9 [shape = 's32[1]{0}', space=sflag, size = 0x4, scoped, tag = 'scoped memory for generator_forward.1']
    #allocation10 [shape = 'u8[65536]{0}', space=vmem, size = 0x10000, scoped, tag = 'input window, operand 5, single buffered']
    #allocation11 [shape = 'u8[16384]{0}', space=vmem, size = 0x4000, scoped, tag = 'input window, operand 6, single buffered']
    #allocation12 [shape = 's32[1]{0}', space=sflag, size = 0x4, scoped, tag = 'scoped memory for generator_forward.1']
    #allocation13 [shape = 'u8[4096]{0}', space=vmem, size = 0x1000, scoped, tag = 'output window, operand 0, single buffered']
    %12 = vsyncpa [#allocation3], 0
    %13 = vsyncpa [#allocation6], 0
    %14 = vsyncpa [#allocation9], 0
    %15 = vsyncpa [#allocation12], 0
    %16 = vsyncpa [#allocation4], 0
    // Predicated region
    $region2: #{generator_forward.1} parent=1 // pred_check
      _
    $region3: #{generator_forward.1} parent=1 // pred_check_branch
      %18 = sbr.rel (0) target = $region5
    $region4: #{generator_forward.1} parent=1 // pred_region
      _
    $region5: #{generator_forward.1} parent=1 // pred_fallthru
      _
    // Predicated region
    $region6: #{generator_forward.1} parent=1 // pred_check
      _
    $region7: #{generator_forward.1} parent=1 // pred_check_branch
      %20 = sbr.rel (0) target = $region9
    $region8: #{generator_forward.1} parent=1 // pred_region
      %22 = vsyncadd [#allocation3], 0
      %s23 = sshll.u32 %s1, 4
      %s24 = int_to_ptr.hbm [resolvable:$true] %s23
      %s25 = sshll.u32 [#allocation2], 4
      %s26 = int_to_ptr.vmem [resolvable:$true] %s25
      %31 = dma.hbm_to_vmem [thread:$0]  %s24, 1024, %s26, [#allocation3], 64, 64, 4
    $region9: #{generator_forward.1} parent=1 // pred_fallthru
      _
    // Predicated region
    $region10: #{generator_forward.1} parent=1 // pred_check
      _
    $region11: #{generator_forward.1} parent=1 // pred_check_branch
      %33 = sbr.rel (0) target = $region13
    $region12: #{generator_forward.1} parent=1 // pred_region
      %35 = vsyncadd [#allocation6], 0
      %s36 = sshll.u32 %s2, 4
      %s37 = int_to_ptr.hbm [resolvable:$true] %s36
      %s38 = sshll.u32 [#allocation5], 4
      %s39 = int_to_ptr.vmem [resolvable:$true] %s38
      %44 = dma.hbm_to_vmem [thread:$0]  %s37, 1024, %s39, [#allocation6], 64, 64, 4
    $region13: #{generator_forward.1} parent=1 // pred_fallthru
      _
    // Predicated region
    $region14: #{generator_forward.1} parent=1 // pred_check
      _
    $region15: #{generator_forward.1} parent=1 // pred_check_branch
      %46 = sbr.rel (0) target = $region17
    $region16: #{generator_forward.1} parent=1 // pred_region
      %48 = vsyncadd [#allocation6], 0
      %s49 = sshll.u32 %s3, 4
      %s50 = int_to_ptr.hbm [resolvable:$true] %s49
      %s51 = sshll.u32 [#allocation7], 4
      %s52 = int_to_ptr.vmem [resolvable:$true] %s51
      %57 = dma.hbm_to_vmem [thread:$0]  %s50, 1024, %s52, [#allocation6], 64, 64, 4
    $region17: #{generator_forward.1} parent=1 // pred_fallthru
      _
    // Predicated region
    $region18: #{generator_forward.1} parent=1 // pred_check
      _
    $region19: #{generator_forward.1} parent=1 // pred_check_branch
      %59 = sbr.rel (0) target = $region21
    $region20: #{generator_forward.1} parent=1 // pred_region
      %61 = vsyncadd [#allocation9], 0
      %s62 = sshll.u32 %s4, 4
      %s63 = int_to_ptr.hbm [resolvable:$true] %s62
      %s64 = sshll.u32 [#allocation8], 4
      %s65 = int_to_ptr.vmem [resolvable:$true] %s64
      %70 = dma.hbm_to_vmem [thread:$0]  %s63, 2048, %s65, [#allocation9], 128, 128, 8
    $region21: #{generator_forward.1} parent=1 // pred_fallthru
      _
    // Predicated region
    $region22: #{generator_forward.1} parent=1 // pred_check
      _
    $region23: #{generator_forward.1} parent=1 // pred_check_branch
      %72 = sbr.rel (0) target = $region25
    $region24: #{generator_forward.1} parent=1 // pred_region
      %74 = vsyncadd [#allocation9], 0
      %s75 = sshll.u32 %s5, 4
      %s76 = int_to_ptr.hbm [resolvable:$true] %s75
      %s77 = sshll.u32 [#allocation10], 4
      %s78 = int_to_ptr.vmem [resolvable:$true] %s77
      %83 = dma.hbm_to_vmem [thread:$0]  %s76, 2048, %s78, [#allocation9], 64, 64, 4
    $region25: #{generator_forward.1} parent=1 // pred_fallthru
      _
    // Predicated region
    $region26: #{generator_forward.1} parent=1 // pred_check
      _
    $region27: #{generator_forward.1} parent=1 // pred_check_branch
      %85 = sbr.rel (0) target = $region29
    $region28: #{generator_forward.1} parent=1 // pred_region
      %87 = vsyncadd [#allocation12], 0
      %s88 = sshll.u32 %s6, 4
      %s89 = int_to_ptr.hbm [resolvable:$true] %s88
      %s90 = sshll.u32 [#allocation11], 4
      %s91 = int_to_ptr.vmem [resolvable:$true] %s90
      %96 = dma.hbm_to_vmem [thread:$0]  %s89, 512, %s91, [#allocation12], 256, 256, 16
    $region29: #{generator_forward.1} parent=1 // pred_fallthru
      _
    // Predicated region
    $region30: #{generator_forward.1} parent=1 // pred_check
      _
    $region31: #{generator_forward.1} parent=1 // pred_check_branch
      %98 = sbr.rel (0) target = $region33
    $region32: #{generator_forward.1} parent=1 // pred_region
      %100 = dma.done [#allocation3], 1024
    $region33: #{generator_forward.1} parent=1 // pred_fallthru
      _
    // Predicated region
    $region34: #{generator_forward.1} parent=1 // pred_check
      _
    $region35: #{generator_forward.1} parent=1 // pred_check_branch
      %102 = sbr.rel (0) target = $region37
    $region36: #{generator_forward.1} parent=1 // pred_region
      %104 = dma.done [#allocation6], 1024
    $region37: #{generator_forward.1} parent=1 // pred_fallthru
      _
    // Predicated region
    $region38: #{generator_forward.1} parent=1 // pred_check
      _
    $region39: #{generator_forward.1} parent=1 // pred_check_branch
      %106 = sbr.rel (0) target = $region41
    $region40: #{generator_forward.1} parent=1 // pred_region
      %108 = dma.done [#allocation6], 1024
    $region41: #{generator_forward.1} parent=1 // pred_fallthru
      _
    // Predicated region
    $region42: #{generator_forward.1} parent=1 // pred_check
      _
    $region43: #{generator_forward.1} parent=1 // pred_check_branch
      %110 = sbr.rel (0) target = $region45
    $region44: #{generator_forward.1} parent=1 // pred_region
      %112 = dma.done [#allocation9], 2048
    $region45: #{generator_forward.1} parent=1 // pred_fallthru
      _
    // Predicated region
    $region46: #{generator_forward.1} parent=1 // pred_check
      _
    $region47: #{generator_forward.1} parent=1 // pred_check_branch
      %114 = sbr.rel (0) target = $region49
    $region48: #{generator_forward.1} parent=1 // pred_region
      %116 = dma.done [#allocation9], 2048
    $region49: #{generator_forward.1} parent=1 // pred_fallthru
      _
    // Predicated region
    $region50: #{generator_forward.1} parent=1 // pred_check
      _
    $region51: #{generator_forward.1} parent=1 // pred_check_branch
      %118 = sbr.rel (0) target = $region53
    $region52: #{generator_forward.1} parent=1 // pred_region
      %120 = dma.done [#allocation12], 512
    $region53: #{generator_forward.1} parent=1 // pred_fallthru
      _
    %v121 = vld [vmem:[%s0] sm:$0xf]
    %v122 = vld [vmem:[#allocation11] ss:$0 sm:$0xff]
    %v123 = vld [vmem:[#allocation11 + $0x4] ss:$0 sm:$0xff]
    %v124 = vld [vmem:[#allocation2] sm:$0xf]
    %v125 = vld [vmem:[#allocation2 + $0x4] sm:$0xf]
    %v126 = vld [vmem:[#allocation2 + $0x8] sm:$0xf]
    %v127 = vld [vmem:[#allocation2 + $0xc] sm:$0xf]
    %v128 = vld [vmem:[#allocation2 + $0x10] sm:$0xf]
    %v129 = vld [vmem:[#allocation2 + $0x14] sm:$0xf]
    %v130 = vld [vmem:[#allocation2 + $0x18] sm:$0xf]
    %v131 = vld [vmem:[#allocation2 + $0x1c] sm:$0xf]
    %v132 = vld [vmem:[#allocation2 + $0x20] sm:$0xf]
    %v133 = vld [vmem:[#allocation2 + $0x24] sm:$0xf]
    %v134 = vld [vmem:[#allocation2 + $0x28] sm:$0xf]
    %v135 = vld [vmem:[#allocation2 + $0x2c] sm:$0xf]
    %v136 = vld [vmem:[#allocation2 + $0x30] sm:$0xf]
    %v137 = vld [vmem:[#allocation2 + $0x34] sm:$0xf]
    %v138 = vld [vmem:[#allocation2 + $0x38] sm:$0xf]
    %v139 = vld [vmem:[#allocation2 + $0x3c] sm:$0xf]
    %v156 = vunpack.c.l.b16 %v124
    %v157 = vunpack.c.l.b16 %v125
    %v158 = vunpack.c.l.b16 %v126
    %v159 = vunpack.c.l.b16 %v127
    %v160 = vunpack.c.l.b16 %v128
    %v161 = vunpack.c.l.b16 %v129
    %v162 = vunpack.c.l.b16 %v130
    %v163 = vunpack.c.l.b16 %v131
    %v164 = vunpack.c.l.b16 %v132
    %v165 = vunpack.c.l.b16 %v133
    %v166 = vunpack.c.l.b16 %v134
    %v167 = vunpack.c.l.b16 %v135
    %v168 = vunpack.c.l.b16 %v136
    %v169 = vunpack.c.l.b16 %v137
    %v170 = vunpack.c.l.b16 %v138
    %v171 = vunpack.c.l.b16 %v139
    %v172 = vpack.c.b16 %v157, %v156
    %v173 = vpack.c.b16 %v159, %v158
    %v174 = vpack.c.b16 %v161, %v160
    %v175 = vpack.c.b16 %v163, %v162
    %v176 = vpack.c.b16 %v165, %v164
    %v177 = vpack.c.b16 %v167, %v166
    %v178 = vpack.c.b16 %v169, %v168
    %v179 = vpack.c.b16 %v171, %v170
    %188 = vmatpush.bf16.msra.mxu0 %v179
    %189 = vmatpush.bf16.msra.mxu0 %v178
    %190 = vmatpush.bf16.msra.mxu0 %v177
    %191 = vmatpush.bf16.msra.mxu0 %v176
    %192 = vmatpush.bf16.msra.mxu0 %v175
    %193 = vmatpush.bf16.msra.mxu0 %v174
    %194 = vmatpush.bf16.msra.mxu0 %v173
    %195 = vmatpush.bf16.msra.mxu0 %v172
    %196 = vmatmul.bf16.gmra.mxu0 %v121
    %v197 = vpop.f32.mrf.mxu0
    %v198 = vadd.f32 0.0, %v197
    %v199 = vpop.f32.mrf.mxu0
    %200 = vdwg.mxu0
    %v201 = vrot.slane %v198, 4
    %v202 = vadd.f32 %v198, %v201
    %v203 = vrot.slane %v202, 2
    %v204 = vadd.f32 %v202, %v203
    %v205 = vrot.slane %v204, 1
    %v206 = vadd.f32 %v204, %v205
    %v207 = vrcp.pop 8.0
    %v208 = vmul.f32 8.0, %v207
    %v209 = vsub.f32 1.0, %v208
    %v210 = vmul.f32 %v207, %v209
    %v211 = vadd.f32 %v207, %v210
    %vm212 = vweird.f32 %v207
    %v213 = vsel %vm212, %v207, %v211
    %v214 = vmul.f32 %v206, %v213
    %v215 = vmul.f32 %v198, %v198
    %v216 = vrot.slane %v215, 4
    %v217 = vadd.f32 %v215, %v216
    %v218 = vrot.slane %v217, 2
    %v219 = vadd.f32 %v217, %v218
    %v220 = vrot.slane %v219, 1
    %v221 = vadd.f32 %v219, %v220
    %v222 = vmul.f32 %v221, %v213
    %v223 = vmul.f32 %v214, %v214
    %v224 = vsub.f32 %v222, %v223
    %v225 = vadd.f32 %v224, 1e-05
    %v226 = vrsqrt.pop %v225
    %v227 = vmul.f32 %v226, %v225
    %v228 = vmul.f32 %v227, %v226
    %v229 = vmul.f32 0.5, %v228
    %v230 = vsub.f32 1.5, %v229
    %v231 = vmul.f32 %v226, %v230
    %vm232 = vweird.f32 %v225
    %vm233 = vweird.f32 %v226
    %vm234 = vmor %vm232, %vm233
    %v235 = vsel %vm234, %v226, %v231
    %v236 = vmul.f32 %v122, %v235
    %v237 = vmul.f32 %v214, %v236
    %v238 = vsub.f32 %v123, %v237
    %v239 = vmul.f32 %v198, %v236
    %v240 = vadd.f32 %v239, %v238
    %v241 = vmax.f32 %v240, 0.0
    %v242 = vpack.c.bf16 %v241, %v241
    %v243 = vld [vmem:[#allocation11 + $0x1] ss:$0 sm:$0xff]
    %v244 = vld [vmem:[#allocation11 + $0x5] ss:$0 sm:$0xff]
    %v245 = vld [vmem:[#allocation5] sm:$0xf]
    %v246 = vld [vmem:[#allocation5 + $0x4] sm:$0xf]
    %v247 = vld [vmem:[#allocation5 + $0x8] sm:$0xf]
    %v248 = vld [vmem:[#allocation5 + $0xc] sm:$0xf]
    %v249 = vld [vmem:[#allocation5 + $0x10] sm:$0xf]
    %v250 = vld [vmem:[#allocation5 + $0x14] sm:$0xf]
    %v251 = vld [vmem:[#allocation5 + $0x18] sm:$0xf]
    %v252 = vld [vmem:[#allocation5 + $0x1c] sm:$0xf]
    %v253 = vld [vmem:[#allocation5 + $0x20] sm:$0xf]
    %v254 = vld [vmem:[#allocation5 + $0x24] sm:$0xf]
    %v255 = vld [vmem:[#allocation5 + $0x28] sm:$0xf]
    %v256 = vld [vmem:[#allocation5 + $0x2c] sm:$0xf]
    %v257 = vld [vmem:[#allocation5 + $0x30] sm:$0xf]
    %v258 = vld [vmem:[#allocation5 + $0x34] sm:$0xf]
    %v259 = vld [vmem:[#allocation5 + $0x38] sm:$0xf]
    %v260 = vld [vmem:[#allocation5 + $0x3c] sm:$0xf]
    %v277 = vunpack.c.l.b16 %v245
    %v278 = vunpack.c.l.b16 %v246
    %v279 = vunpack.c.l.b16 %v247
    %v280 = vunpack.c.l.b16 %v248
    %v281 = vunpack.c.l.b16 %v249
    %v282 = vunpack.c.l.b16 %v250
    %v283 = vunpack.c.l.b16 %v251
    %v284 = vunpack.c.l.b16 %v252
    %v285 = vunpack.c.l.b16 %v253
    %v286 = vunpack.c.l.b16 %v254
    %v287 = vunpack.c.l.b16 %v255
    %v288 = vunpack.c.l.b16 %v256
    %v289 = vunpack.c.l.b16 %v257
    %v290 = vunpack.c.l.b16 %v258
    %v291 = vunpack.c.l.b16 %v259
    %v292 = vunpack.c.l.b16 %v260
    %v293 = vpack.c.b16 %v278, %v277
    %v294 = vpack.c.b16 %v280, %v279
    %v295 = vpack.c.b16 %v282, %v281
    %v296 = vpack.c.b16 %v284, %v283
    %v297 = vpack.c.b16 %v286, %v285
    %v298 = vpack.c.b16 %v288, %v287
    %v299 = vpack.c.b16 %v290, %v289
    %v300 = vpack.c.b16 %v292, %v291
    %309 = vmatpush.bf16.msra.mxu0 %v300
    %310 = vmatpush.bf16.msra.mxu0 %v299
    %311 = vmatpush.bf16.msra.mxu0 %v298
    %312 = vmatpush.bf16.msra.mxu0 %v297
    %313 = vmatpush.bf16.msra.mxu0 %v296
    %314 = vmatpush.bf16.msra.mxu0 %v295
    %315 = vmatpush.bf16.msra.mxu0 %v294
    %316 = vmatpush.bf16.msra.mxu0 %v293
    %317 = vmatmul.bf16.gmra.mxu0 %v242
    %v318 = vpop.f32.mrf.mxu0
    %v319 = vadd.f32 0.0, %v318
    %v320 = vpop.f32.mrf.mxu0
    %321 = vdwg.mxu0
    %v322 = vrot.slane %v319, 4
    %v323 = vadd.f32 %v319, %v322
    %v324 = vrot.slane %v323, 2
    %v325 = vadd.f32 %v323, %v324
    %v326 = vrot.slane %v325, 1
    %v327 = vadd.f32 %v325, %v326
    %v328 = vmul.f32 %v327, %v213
    %v329 = vmul.f32 %v319, %v319
    %v330 = vrot.slane %v329, 4
    %v331 = vadd.f32 %v329, %v330
    %v332 = vrot.slane %v331, 2
    %v333 = vadd.f32 %v331, %v332
    %v334 = vrot.slane %v333, 1
    %v335 = vadd.f32 %v333, %v334
    %v336 = vmul.f32 %v335, %v213
    %v337 = vmul.f32 %v328, %v328
    %v338 = vsub.f32 %v336, %v337
    %v339 = vadd.f32 %v338, 1e-05
    %v340 = vrsqrt.pop %v339
    %v341 = vmul.f32 %v340, %v339
    %v342 = vmul.f32 %v341, %v340
    %v343 = vmul.f32 0.5, %v342
    %v344 = vsub.f32 1.5, %v343
    %v345 = vmul.f32 %v340, %v344
    %vm346 = vweird.f32 %v339
    %vm347 = vweird.f32 %v340
    %vm348 = vmor %vm346, %vm347
    %v349 = vsel %vm348, %v340, %v345
    %v350 = vmul.f32 %v243, %v349
    %v351 = vmul.f32 %v328, %v350
    %v352 = vsub.f32 %v244, %v351
    %v353 = vmul.f32 %v319, %v350
    %v354 = vadd.f32 %v353, %v352
    %v355 = vmax.f32 %v354, 0.0
    %v356 = vpack.c.bf16 %v355, %v355
    %v357 = vld [vmem:[#allocation11 + $0x2] ss:$0 sm:$0xff]
    %v358 = vld [vmem:[#allocation11 + $0x6] ss:$0 sm:$0xff]
    %v359 = vld [vmem:[#allocation7] sm:$0xf]
    %v360 = vld [vmem:[#allocation7 + $0x4] sm:$0xf]
    %v361 = vld [vmem:[#allocation7 + $0x8] sm:$0xf]
    %v362 = vld [vmem:[#allocation7 + $0xc] sm:$0xf]
    %v363 = vld [vmem:[#allocation7 + $0x10] sm:$0xf]
    %v364 = vld [vmem:[#allocation7 + $0x14] sm:$0xf]
    %v365 = vld [vmem:[#allocation7 + $0x18] sm:$0xf]
    %v366 = vld [vmem:[#allocation7 + $0x1c] sm:$0xf]
    %v367 = vld [vmem:[#allocation7 + $0x20] sm:$0xf]
    %v368 = vld [vmem:[#allocation7 + $0x24] sm:$0xf]
    %v369 = vld [vmem:[#allocation7 + $0x28] sm:$0xf]
    %v370 = vld [vmem:[#allocation7 + $0x2c] sm:$0xf]
    %v371 = vld [vmem:[#allocation7 + $0x30] sm:$0xf]
    %v372 = vld [vmem:[#allocation7 + $0x34] sm:$0xf]
    %v373 = vld [vmem:[#allocation7 + $0x38] sm:$0xf]
    %v374 = vld [vmem:[#allocation7 + $0x3c] sm:$0xf]
    %v391 = vunpack.c.l.b16 %v359
    %v392 = vunpack.c.l.b16 %v360
    %v393 = vunpack.c.l.b16 %v361
    %v394 = vunpack.c.l.b16 %v362
    %v395 = vunpack.c.l.b16 %v363
    %v396 = vunpack.c.l.b16 %v364
    %v397 = vunpack.c.l.b16 %v365
    %v398 = vunpack.c.l.b16 %v366
    %v399 = vunpack.c.l.b16 %v367
    %v400 = vunpack.c.l.b16 %v368
    %v401 = vunpack.c.l.b16 %v369
    %v402 = vunpack.c.l.b16 %v370
    %v403 = vunpack.c.l.b16 %v371
    %v404 = vunpack.c.l.b16 %v372
    %v405 = vunpack.c.l.b16 %v373
    %v406 = vunpack.c.l.b16 %v374
    %v407 = vpack.c.b16 %v392, %v391
    %v408 = vpack.c.b16 %v394, %v393
    %v409 = vpack.c.b16 %v396, %v395
    %v410 = vpack.c.b16 %v398, %v397
    %v411 = vpack.c.b16 %v400, %v399
    %v412 = vpack.c.b16 %v402, %v401
    %v413 = vpack.c.b16 %v404, %v403
    %v414 = vpack.c.b16 %v406, %v405
    %423 = vmatpush.bf16.msra.mxu0 %v414
    %424 = vmatpush.bf16.msra.mxu0 %v413
    %425 = vmatpush.bf16.msra.mxu0 %v412
    %426 = vmatpush.bf16.msra.mxu0 %v411
    %427 = vmatpush.bf16.msra.mxu0 %v410
    %428 = vmatpush.bf16.msra.mxu0 %v409
    %429 = vmatpush.bf16.msra.mxu0 %v408
    %430 = vmatpush.bf16.msra.mxu0 %v407
    %431 = vmatmul.bf16.gmra.mxu0 %v356
    %v432 = vpop.f32.mrf.mxu0
    %v433 = vadd.f32 0.0, %v432
    %v434 = vpop.f32.mrf.mxu0
    %435 = vdwg.mxu0
    %v436 = vrot.slane %v433, 4
    %v437 = vadd.f32 %v433, %v436
    %v438 = vrot.slane %v437, 2
    %v439 = vadd.f32 %v437, %v438
    %v440 = vrot.slane %v439, 1
    %v441 = vadd.f32 %v439, %v440
    %v442 = vmul.f32 %v441, %v213
    %v443 = vmul.f32 %v433, %v433
    %v444 = vrot.slane %v443, 4
    %v445 = vadd.f32 %v443, %v444
    %v446 = vrot.slane %v445, 2
    %v447 = vadd.f32 %v445, %v446
    %v448 = vrot.slane %v447, 1
    %v449 = vadd.f32 %v447, %v448
    %v450 = vmul.f32 %v449, %v213
    %v451 = vmul.f32 %v442, %v442
    %v452 = vsub.f32 %v450, %v451
    %v453 = vadd.f32 %v452, 1e-05
    %v454 = vrsqrt.pop %v453
    %v455 = vmul.f32 %v454, %v453
    %v456 = vmul.f32 %v455, %v454
    %v457 = vmul.f32 0.5, %v456
    %v458 = vsub.f32 1.5, %v457
    %v459 = vmul.f32 %v454, %v458
    %vm460 = vweird.f32 %v453
    %vm461 = vweird.f32 %v454
    %vm462 = vmor %vm460, %vm461
    %v463 = vsel %vm462, %v454, %v459
    %v464 = vmul.f32 %v357, %v463
    %v465 = vmul.f32 %v442, %v464
    %v466 = vsub.f32 %v358, %v465
    %v467 = vmul.f32 %v433, %v464
    %v468 = vadd.f32 %v467, %v466
    %v469 = vmax.f32 %v468, 0.0
    %v470 = vpack.c.bf16 %v469, %v469
    %s471 = scalar_lea.vmem [#allocation11], 3
    %v472 = vld [vmem:[%s471] ss:$8 sm:$0x3]
    %s473 = scalar_lea.vmem [#allocation11], 7
    %v474 = vld [vmem:[%s473] ss:$8 sm:$0x3]
    %v475 = vld [vmem:[#allocation8] sm:$0xff]
    %v476 = vld [vmem:[#allocation8 + $0x8] sm:$0xff]
    %v477 = vld [vmem:[#allocation8 + $0x10] sm:$0xff]
    %v478 = vld [vmem:[#allocation8 + $0x18] sm:$0xff]
    %v479 = vld [vmem:[#allocation8 + $0x20] sm:$0xff]
    %v480 = vld [vmem:[#allocation8 + $0x28] sm:$0xff]
    %v481 = vld [vmem:[#allocation8 + $0x30] sm:$0xff]
    %v482 = vld [vmem:[#allocation8 + $0x38] sm:$0xff]
    %v483 = vld [vmem:[#allocation8 + $0x40] sm:$0xff]
    %v484 = vld [vmem:[#allocation8 + $0x48] sm:$0xff]
    %v485 = vld [vmem:[#allocation8 + $0x50] sm:$0xff]
    %v486 = vld [vmem:[#allocation8 + $0x58] sm:$0xff]
    %v487 = vld [vmem:[#allocation8 + $0x60] sm:$0xff]
    %v488 = vld [vmem:[#allocation8 + $0x68] sm:$0xff]
    %v489 = vld [vmem:[#allocation8 + $0x70] sm:$0xff]
    %v490 = vld [vmem:[#allocation8 + $0x78] sm:$0xff]
    %v507 = vunpack.c.l.b16 %v475
    %v508 = vunpack.c.h.b16 %v475
    %v509 = vunpack.c.l.b16 %v476
    %v510 = vunpack.c.h.b16 %v476
    %v511 = vunpack.c.l.b16 %v477
    %v512 = vunpack.c.h.b16 %v477
    %v513 = vunpack.c.l.b16 %v478
    %v514 = vunpack.c.h.b16 %v478
    %v515 = vunpack.c.l.b16 %v479
    %v516 = vunpack.c.h.b16 %v479
    %v517 = vunpack.c.l.b16 %v480
    %v518 = vunpack.c.h.b16 %v480
    %v519 = vunpack.c.l.b16 %v481
    %v520 = vunpack.c.h.b16 %v481
    %v521 = vunpack.c.l.b16 %v482
    %v522 = vunpack.c.h.b16 %v482
    %v523 = vunpack.c.l.b16 %v483
    %v524 = vunpack.c.h.b16 %v483
    %v525 = vunpack.c.l.b16 %v484
    %v526 = vunpack.c.h.b16 %v484
    %v527 = vunpack.c.l.b16 %v485
    %v528 = vunpack.c.h.b16 %v485
    %v529 = vunpack.c.l.b16 %v486
    %v530 = vunpack.c.h.b16 %v486
    %v531 = vunpack.c.l.b16 %v487
    %v532 = vunpack.c.h.b16 %v487
    %v533 = vunpack.c.l.b16 %v488
    %v534 = vunpack.c.h.b16 %v488
    %v535 = vunpack.c.l.b16 %v489
    %v536 = vunpack.c.h.b16 %v489
    %v537 = vunpack.c.l.b16 %v490
    %v538 = vunpack.c.h.b16 %v490
    %v539 = vpack.c.b16 %v509, %v507
    %v540 = vpack.c.b16 %v510, %v508
    %v541 = vpack.c.b16 %v513, %v511
    %v542 = vpack.c.b16 %v514, %v512
    %v543 = vpack.c.b16 %v517, %v515
    %v544 = vpack.c.b16 %v518, %v516
    %v545 = vpack.c.b16 %v521, %v519
    %v546 = vpack.c.b16 %v522, %v520
    %v547 = vpack.c.b16 %v525, %v523
    %v548 = vpack.c.b16 %v526, %v524
    %v549 = vpack.c.b16 %v529, %v527
    %v550 = vpack.c.b16 %v530, %v528
    %v551 = vpack.c.b16 %v533, %v531
    %v552 = vpack.c.b16 %v534, %v532
    %v553 = vpack.c.b16 %v537, %v535
    %v554 = vpack.c.b16 %v538, %v536
    %571 = vmatpush.bf16.msra.mxu0 %v553
    %572 = vmatpush.bf16.msra.mxu0 %v551
    %573 = vmatpush.bf16.msra.mxu0 %v549
    %574 = vmatpush.bf16.msra.mxu0 %v547
    %575 = vmatpush.bf16.msra.mxu0 %v545
    %576 = vmatpush.bf16.msra.mxu0 %v543
    %577 = vmatpush.bf16.msra.mxu0 %v541
    %578 = vmatpush.bf16.msra.mxu0 %v539
    %579 = vmatmul.bf16.gmra.mxu0 %v470
    %v580 = vpop.f32.mrf.mxu0
    %v581 = vadd.f32 0.0, %v580
    %v582 = vpop.f32.mrf.mxu0
    %583 = vdwg.mxu0
    %584 = vmatpush.bf16.msra.mxu0 %v554
    %585 = vmatpush.bf16.msra.mxu0 %v552
    %586 = vmatpush.bf16.msra.mxu0 %v550
    %587 = vmatpush.bf16.msra.mxu0 %v548
    %588 = vmatpush.bf16.msra.mxu0 %v546
    %589 = vmatpush.bf16.msra.mxu0 %v544
    %590 = vmatpush.bf16.msra.mxu0 %v542
    %591 = vmatpush.bf16.msra.mxu0 %v540
    %592 = vmatmul.bf16.gmra.mxu0 %v470
    %v593 = vpop.f32.mrf.mxu0
    %v594 = vadd.f32 0.0, %v593
    %v595 = vpop.f32.mrf.mxu0
    %596 = vdwg.mxu0
    %v597 = vrot.slane %v581, 4
    %v598 = vadd.f32 %v581, %v597
    %v599 = vrot.slane %v598, 2
    %v600 = vadd.f32 %v598, %v599
    %v601 = vrot.slane %v600, 1
    %v602 = vadd.f32 %v600, %v601
    %v603 = vrot.slane %v594, 4
    %v604 = vadd.f32 %v594, %v603
    %v605 = vrot.slane %v604, 2
    %v606 = vadd.f32 %v604, %v605
    %v607 = vrot.slane %v606, 1
    %v608 = vadd.f32 %v606, %v607
    %v609 = vmul.f32 %v602, %v213
    %v610 = vmul.f32 %v608, %v213
    %v611 = vmul.f32 %v581, %v581
    %v612 = vmul.f32 %v594, %v594
    %v613 = vrot.slane %v611, 4
    %v614 = vadd.f32 %v611, %v613
    %v615 = vrot.slane %v614, 2
    %v616 = vadd.f32 %v614, %v615
    %v617 = vrot.slane %v616, 1
    %v618 = vadd.f32 %v616, %v617
    %v619 = vrot.slane %v612, 4
    %v620 = vadd.f32 %v612, %v619
    %v621 = vrot.slane %v620, 2
    %v622 = vadd.f32 %v620, %v621
    %v623 = vrot.slane %v622, 1
    %v624 = vadd.f32 %v622, %v623
    %v625 = vmul.f32 %v618, %v213
    %v626 = vmul.f32 %v624, %v213
    %v627 = vmul.f32 %v609, %v609
    %v628 = vmul.f32 %v610, %v610
    %v629 = vsub.f32 %v625, %v627
    %v630 = vsub.f32 %v626, %v628
    %v631 = vadd.f32 %v629, 1e-05
    %v632 = vadd.f32 %v630, 1e-05
    %v633 = vrsqrt.pop %v631
    %v634 = vmul.f32 %v633, %v631
    %v635 = vmul.f32 %v634, %v633
    %v636 = vmul.f32 0.5, %v635
    %v637 = vsub.f32 1.5, %v636
    %v638 = vmul.f32 %v633, %v637
    %vm639 = vweird.f32 %v631
    %vm640 = vweird.f32 %v633
    %vm641 = vmor %vm639, %vm640
    %v642 = vsel %vm641, %v633, %v638
    %v643 = vrsqrt.pop %v632
    %v644 = vmul.f32 %v643, %v632
    %v645 = vmul.f32 %v644, %v643
    %v646 = vmul.f32 0.5, %v645
    %v647 = vsub.f32 1.5, %v646
    %v648 = vmul.f32 %v643, %v647
    %vm649 = vweird.f32 %v632
    %vm650 = vweird.f32 %v643
    %vm651 = vmor %vm649, %vm650
    %v652 = vsel %vm651, %v643, %v648
    %v655 = vrot.slane %v652, 7
    %vm656 = vcmask 1040384
    %v657 = vsel %vm656, %v642, %v655
    %v659 = vmul.f32 %v472, %v657
    %v661 = vperm.slane %v659, 0
    %v662 = vperm.slane %v659, 1
    %v665 = vmul.f32 %v609, %v661
    %v666 = vmul.f32 %v610, %v662
    %v669 = vrot.slane %v666, 7
    %v670 = vsel %vm656, %v665, %v669
    %v672 = vsub.f32 %v474, %v670
    %v673 = vmul.f32 %v581, %v661
    %v674 = vmul.f32 %v594, %v662
    %v676 = vperm.slane %v672, 0
    %v677 = vperm.slane %v672, 1
    %v680 = vadd.f32 %v673, %v676
    %v681 = vadd.f32 %v674, %v677
    %v682 = vmax.f32 %v680, 0.0
    %v683 = vmax.f32 %v681, 0.0
    %v684 = vpack.c.bf16 %v682, %v682
    %v685 = vpack.c.bf16 %v683, %v683
    %v686 = vld [vmem:[#allocation10] sm:$0xf]
    %v687 = vld [vmem:[#allocation10 + $0x4] sm:$0xf]
    %v688 = vld [vmem:[#allocation10 + $0x8] sm:$0xf]
    %v689 = vld [vmem:[#allocation10 + $0xc] sm:$0xf]
    %v690 = vld [vmem:[#allocation10 + $0x10] sm:$0xf]
    %v691 = vld [vmem:[#allocation10 + $0x14] sm:$0xf]
    %v692 = vld [vmem:[#allocation10 + $0x18] sm:$0xf]
    %v693 = vld [vmem:[#allocation10 + $0x1c] sm:$0xf]
    %v694 = vld [vmem:[#allocation10 + $0x20] sm:$0xf]
    %v695 = vld [vmem:[#allocation10 + $0x24] sm:$0xf]
    %v696 = vld [vmem:[#allocation10 + $0x28] sm:$0xf]
    %v697 = vld [vmem:[#allocation10 + $0x2c] sm:$0xf]
    %v698 = vld [vmem:[#allocation10 + $0x30] sm:$0xf]
    %v699 = vld [vmem:[#allocation10 + $0x34] sm:$0xf]
    %v700 = vld [vmem:[#allocation10 + $0x38] sm:$0xf]
    %v701 = vld [vmem:[#allocation10 + $0x3c] sm:$0xf]
    %v702 = vld [vmem:[#allocation10 + $0x40] sm:$0xf]
    %v703 = vld [vmem:[#allocation10 + $0x44] sm:$0xf]
    %v704 = vld [vmem:[#allocation10 + $0x48] sm:$0xf]
    %v705 = vld [vmem:[#allocation10 + $0x4c] sm:$0xf]
    %v706 = vld [vmem:[#allocation10 + $0x50] sm:$0xf]
    %v707 = vld [vmem:[#allocation10 + $0x54] sm:$0xf]
    %v708 = vld [vmem:[#allocation10 + $0x58] sm:$0xf]
    %v709 = vld [vmem:[#allocation10 + $0x5c] sm:$0xf]
    %v710 = vld [vmem:[#allocation10 + $0x60] sm:$0xf]
    %v711 = vld [vmem:[#allocation10 + $0x64] sm:$0xf]
    %v712 = vld [vmem:[#allocation10 + $0x68] sm:$0xf]
    %v713 = vld [vmem:[#allocation10 + $0x6c] sm:$0xf]
    %v714 = vld [vmem:[#allocation10 + $0x70] sm:$0xf]
    %v715 = vld [vmem:[#allocation10 + $0x74] sm:$0xf]
    %v716 = vld [vmem:[#allocation10 + $0x78] sm:$0xf]
    %v717 = vld [vmem:[#allocation10 + $0x7c] sm:$0xf]
    %v718 = vld [vmem:[#allocation11 + $0x10] ss:$0 sm:$0xff]
    %v751 = vunpack.c.l.b16 %v686
    %v752 = vunpack.c.l.b16 %v687
    %v753 = vunpack.c.l.b16 %v688
    %v754 = vunpack.c.l.b16 %v689
    %v755 = vunpack.c.l.b16 %v690
    %v756 = vunpack.c.l.b16 %v691
    %v757 = vunpack.c.l.b16 %v692
    %v758 = vunpack.c.l.b16 %v693
    %v759 = vunpack.c.l.b16 %v694
    %v760 = vunpack.c.l.b16 %v695
    %v761 = vunpack.c.l.b16 %v696
    %v762 = vunpack.c.l.b16 %v697
    %v763 = vunpack.c.l.b16 %v698
    %v764 = vunpack.c.l.b16 %v699
    %v765 = vunpack.c.l.b16 %v700
    %v766 = vunpack.c.l.b16 %v701
    %v767 = vunpack.c.l.b16 %v702
    %v768 = vunpack.c.l.b16 %v703
    %v769 = vunpack.c.l.b16 %v704
    %v770 = vunpack.c.l.b16 %v705
    %v771 = vunpack.c.l.b16 %v706
    %v772 = vunpack.c.l.b16 %v707
    %v773 = vunpack.c.l.b16 %v708
    %v774 = vunpack.c.l.b16 %v709
    %v775 = vunpack.c.l.b16 %v710
    %v776 = vunpack.c.l.b16 %v711
    %v777 = vunpack.c.l.b16 %v712
    %v778 = vunpack.c.l.b16 %v713
    %v779 = vunpack.c.l.b16 %v714
    %v780 = vunpack.c.l.b16 %v715
    %v781 = vunpack.c.l.b16 %v716
    %v782 = vunpack.c.l.b16 %v717
    %v783 = vpack.c.b16 %v752, %v751
    %v784 = vpack.c.b16 %v754, %v753
    %v785 = vpack.c.b16 %v756, %v755
    %v786 = vpack.c.b16 %v758, %v757
    %v787 = vpack.c.b16 %v760, %v759
    %v788 = vpack.c.b16 %v762, %v761
    %v789 = vpack.c.b16 %v764, %v763
    %v790 = vpack.c.b16 %v766, %v765
    %v791 = vpack.c.b16 %v768, %v767
    %v792 = vpack.c.b16 %v770, %v769
    %v793 = vpack.c.b16 %v772, %v771
    %v794 = vpack.c.b16 %v774, %v773
    %v795 = vpack.c.b16 %v776, %v775
    %v796 = vpack.c.b16 %v778, %v777
    %v797 = vpack.c.b16 %v780, %v779
    %v798 = vpack.c.b16 %v782, %v781
    %815 = vmatpush.bf16.msra.mxu0 %v790
    %816 = vmatpush.bf16.msra.mxu0 %v789
    %817 = vmatpush.bf16.msra.mxu0 %v788
    %818 = vmatpush.bf16.msra.mxu0 %v787
    %819 = vmatpush.bf16.msra.mxu0 %v786
    %820 = vmatpush.bf16.msra.mxu0 %v785
    %821 = vmatpush.bf16.msra.mxu0 %v784
    %822 = vmatpush.bf16.msra.mxu0 %v783
    %823 = vmatmul.bf16.gmra.mxu0 %v684
    %v824 = vpop.f32.mrf.mxu0
    %v825 = vadd.f32 %v718, %v824
    %v826 = vpop.f32.mrf.mxu0
    %827 = vdwg.mxu0
    %828 = vmatpush.bf16.msra.mxu0 %v798
    %829 = vmatpush.bf16.msra.mxu0 %v797
    %830 = vmatpush.bf16.msra.mxu0 %v796
    %831 = vmatpush.bf16.msra.mxu0 %v795
    %832 = vmatpush.bf16.msra.mxu0 %v794
    %833 = vmatpush.bf16.msra.mxu0 %v793
    %834 = vmatpush.bf16.msra.mxu0 %v792
    %835 = vmatpush.bf16.msra.mxu0 %v791
    %836 = vmatmul.bf16.gmra.mxu0 %v685
    %v837 = vpop.f32.mrf.mxu0
    %v838 = vadd.f32 %v825, %v837
    %v839 = vpop.f32.mrf.mxu0
    %840 = vdwg.mxu0
    %v841 = vsub.f32 0.0, %v838
    %v842 = vmul.f32 %v841, 1.442695
    %v843 = vpow.pop %v842
    %v844 = vadd.f32 %v843, 1.0
    %v845 = vrcp.pop %v844
    %846 = vst [vmem:[#allocation13] sm:$0xff] %v845
    // Predicated region
    $region54: #{generator_forward.1} parent=1 // pred_check
      _
    $region55: #{generator_forward.1} parent=1 // pred_check_branch
      %848 = sbr.rel (0) target = $region57
    $region56: #{generator_forward.1} parent=1 // pred_region
      %850 = vsyncadd [#allocation4], 0
      %s852 = sshll.u32 [#allocation13], 4
      %s853 = int_to_ptr.vmem [resolvable:$true] %s852
      %s854 = sshll.u32 %s7, 4
      %s855 = int_to_ptr.hbm [resolvable:$true] %s854
      %857 = dma.vmem_to_hbm [thread:$0]  %s853, 128, %s855, [#allocation4]
    $region57: #{generator_forward.1} parent=1 // pred_fallthru
      _
    // Predicated region
    $region58: #{generator_forward.1} parent=1 // pred_check
      _
    $region59: #{generator_forward.1} parent=1 // pred_check_branch
      %859 = sbr.rel (0) target = $region61
    $region60: #{generator_forward.1} parent=1 // pred_region
      %861 = dma.done [#allocation4], 128
    $region61: #{generator_forward.1} parent=1 // pred_fallthru
      _
    %862 = vsyncpa [#allocation3], 1
    %863 = vsyncpa [#allocation6], 1
    %864 = vsyncpa [#allocation9], 1
    %865 = vsyncpa [#allocation12], 1
    %866 = vsyncpa [#allocation4], 1

</llo_original>
